<compile_context>
chip_gen: v7x
topology: tpu7x:2x2x1
jax: 0.10.0
libtpu: 0.0.40
codegen_flags: <defaults>
</compile_context>

<pallas_src>
import jax
import jax.numpy as jnp
from jax import lax
from jax.experimental import pallas as pl
from jax.experimental.pallas import tpu as pltpu


def mlp_kernel(x_ref, w1_ref, b1_ref, w2_ref, b2_ref, o_ref):
    # x_ref:  (TB, D_in)     VMEM tile of the batch (streamed)
    # w1_ref: (H, D_in)      full weight, PyTorch nn.Linear layout (resident)
    # b1_ref: (1, H)
    # w2_ref: (D_out, H)     full weight, PyTorch layout (resident)
    # b2_ref: (1, D_out)
    # o_ref:  (TB, D_out)
    x = x_ref[...]
    w1 = w1_ref[...]

    # Hidden layer: x @ W1^T + b1, ReLU.
    # Contract x dim 1 with w1 dim 1 -> same MXU matmul as a pre-transposed W1,
    # f32 accumulation, no wrapper transpose and no in-kernel up-cast.
    h = lax.dot_general(
        x, w1,
        dimension_numbers=(((1,), (1,)), ((), ())),
        preferred_element_type=jnp.float32)                # (TB, H) f32
    h = h + b1_ref[...].astype(jnp.float32)                # broadcast (1,H)
    h = jnp.maximum(h, 0.0)                                # ReLU on the VPU

    # Output layer: h @ W2^T + b2.
    w2 = w2_ref[...]
    if h.dtype != w2.dtype:
        # Only taken when weights are lower precision (e.g. bf16): feed the MXU
        # its native dtype and keep f32 accumulation.
        h = h.astype(w2.dtype)
    y = lax.dot_general(
        h, w2,
        dimension_numbers=(((1,), (1,)), ((), ())),
        preferred_element_type=jnp.float32)                # (TB, D_out) f32
    y = y + b2_ref[...].astype(jnp.float32)

    o_ref[...] = y.astype(o_ref.dtype)


def _round_up(a, m):
    return ((a + m - 1) // m) * m


def mlp_regressor_forward(x, w1, b1, w2, b2, *, batch_tile=512):
    """Pallas forward for MLPRegressor.

    Args:
      x:  [B, input_dim]
      w1: [hidden_dim, input_dim]   (PyTorch nn.Linear weight layout, unchanged)
      b1: [hidden_dim]
      w2: [output_dim, hidden_dim]
      b2: [output_dim]
    Returns:
      [B, output_dim]
    """
    B, D_in = x.shape
    H = w1.shape[0]
    D_out = w2.shape[0]

    # Effective batch tile: big enough to amortize per-step pipeline overhead and
    # fill MXU rows, but never larger than the (8-aligned) batch itself.
    tb = min(batch_tile, _round_up(B, 8))
    B_pad = _round_up(B, tb)
    x_p = x if B_pad == B else jnp.pad(x, ((0, B_pad - B), (0, 0)))

    # Biases as 2-D rows (pure metadata reshape, no data movement).
    b1r = b1.reshape(1, H)
    b2r = b2.reshape(1, D_out)

    grid = (B_pad // tb,)

    out = pl.pallas_call(
        mlp_kernel,
        out_shape=jax.ShapeDtypeStruct((B_pad, D_out), x.dtype),
        grid_spec=pltpu.PrefetchScalarGridSpec(
            num_scalar_prefetch=0,
            grid=grid,
            in_specs=[
                pl.BlockSpec((tb, D_in), lambda i: (i, 0)),    # x tile (streamed)
                pl.BlockSpec((H, D_in), lambda i: (0, 0)),     # W1 whole (resident)
                pl.BlockSpec((1, H), lambda i: (0, 0)),        # b1
                pl.BlockSpec((D_out, H), lambda i: (0, 0)),    # W2 whole (resident)
                pl.BlockSpec((1, D_out), lambda i: (0, 0)),    # b2
            ],
            out_specs=pl.BlockSpec((tb, D_out), lambda i: (i, 0)),
        ),
        compiler_params=pltpu.CompilerParams(
            dimension_semantics=("parallel",)),
    )(x_p, w1, b1r, w2, b2r)

    # TODO(synk): if hidden_dim/input_dim ever grow into the thousands, add a
    # K-tiled 'arbitrary' grid axis with an f32 VMEM accumulator instead of
    # keeping whole weights resident (v7x VMEM is only 64 MiB).
    return out if B_pad == B else out[:B]


def mlp_reference(x, w1, b1, w2, b2):
    h = jnp.maximum(x @ w1.T + b1, 0.0)
    return h @ w2.T + b2


if __name__ == "__main__":
    # Small shapes consistent with the module's forward. Batch deliberately not a
    # multiple of 8 to exercise the pad-and-slice remainder path.
    batch, input_dim, hidden_dim, output_dim = 12, 64, 32, 16

    key = jax.random.PRNGKey(0)
    kx, kw1, kb1, kw2, kb2 = jax.random.split(key, 5)

    x = jax.random.normal(kx, (batch, input_dim), dtype=jnp.float32)
    # Deterministic init mimicking nn.Linear's uniform(-1/sqrt(fan_in), 1/sqrt(fan_in)).
    bound1 = 1.0 / (input_dim ** 0.5)
    w1 = jax.random.uniform(kw1, (hidden_dim, input_dim),
                            minval=-bound1, maxval=bound1, dtype=jnp.float32)
    b1 = jax.random.uniform(kb1, (hidden_dim,),
                            minval=-bound1, maxval=bound1, dtype=jnp.float32)
    bound2 = 1.0 / (hidden_dim ** 0.5)
    w2 = jax.random.uniform(kw2, (output_dim, hidden_dim),
                            minval=-bound2, maxval=bound2, dtype=jnp.float32)
    b2 = jax.random.uniform(kb2, (output_dim,),
                            minval=-bound2, maxval=bound2, dtype=jnp.float32)

    out = mlp_regressor_forward(x, w1, b1, w2, b2)
    out = jax.block_until_ready(out)

    ref = mlp_reference(x, w1, b1, w2, b2)
    assert out.shape == (batch, output_dim)
    assert jnp.allclose(out, ref, atol=1e-5, rtol=1e-5), "mismatch vs reference"

    print("KERNEL_OK")
</pallas_src>

<mosaic_0001>
module attributes {stable_mosaic.version = 11 : i64} {
  func.func @mlp_kernel(%arg0: i32, %arg1: memref<16x64xf32, #tpu.memory_space<vmem>>, %arg2: memref<32x64xf32, #tpu.memory_space<vmem>>, %arg3: memref<1x32xf32, #tpu.memory_space<vmem>>, %arg4: memref<16x32xf32, #tpu.memory_space<vmem>>, %arg5: memref<1x16xf32, #tpu.memory_space<vmem>>, %arg6: memref<16x16xf32, #tpu.memory_space<vmem>>) attributes {dimension_semantics = [#tpu.dimension_semantics<parallel>], iteration_bounds = array<i64: 1>, scalar_prefetch = 0 : i64, scratch_operands = 0 : i64, tpu.core_type = #tpu.core_type<tc>, window_params = [{transform_indices = @transform_0, window_bounds = array<i64: 16, 64>}, {pipeline_mode = #tpu.pipeline_mode<synchronous>, transform_indices = @transform_1, window_bounds = array<i64: 32, 64>}, {pipeline_mode = #tpu.pipeline_mode<synchronous>, transform_indices = @transform_2, window_bounds = array<i64: 1, 32>}, {pipeline_mode = #tpu.pipeline_mode<synchronous>, transform_indices = @transform_3, window_bounds = array<i64: 16, 32>}, {pipeline_mode = #tpu.pipeline_mode<synchronous>, transform_indices = @transform_4, window_bounds = array<i64: 1, 16>}, {transform_indices = @transform_5, window_bounds = array<i64: 16, 16>}]} {
    %c0 = arith.constant 0 : index
    %c0_0 = arith.constant 0 : index
    %0 = vector.load %arg1[%c0, %c0_0] : memref<16x64xf32, #tpu.memory_space<vmem>>, vector<16x64xf32>
    %c0_1 = arith.constant 0 : index
    %c0_2 = arith.constant 0 : index
    %1 = vector.load %arg2[%c0_1, %c0_2] : memref<32x64xf32, #tpu.memory_space<vmem>>, vector<32x64xf32>
    %cst = arith.constant dense<0.000000e+00> : vector<16x32xf32>
    %2 = tpu.matmul %0, %1, %cst {dimension_numbers = #tpu.dot_dimension_numbers<[1], [1], [0], [0], [0, 0, 1, 0], [], []>} : vector<16x64xf32>, vector<32x64xf32>, vector<16x32xf32> -> vector<16x32xf32>
    %c0_3 = arith.constant 0 : index
    %c0_4 = arith.constant 0 : index
    %3 = vector.load %arg3[%c0_3, %c0_4] : memref<1x32xf32, #tpu.memory_space<vmem>>, vector<1x32xf32>
    %4 = vector.broadcast %3 : vector<1x32xf32> to vector<16x32xf32>
    %5 = arith.addf %2, %4 : vector<16x32xf32>
    %cst_5 = arith.constant 0.000000e+00 : f32
    %6 = vector.broadcast %cst_5 : f32 to vector<16x32xf32>
    %7 = arith.maximumf %5, %6 : vector<16x32xf32>
    %c0_6 = arith.constant 0 : index
    %c0_7 = arith.constant 0 : index
    %8 = vector.load %arg4[%c0_6, %c0_7] : memref<16x32xf32, #tpu.memory_space<vmem>>, vector<16x32xf32>
    %cst_8 = arith.constant dense<0.000000e+00> : vector<16x16xf32>
    %9 = tpu.matmul %7, %8, %cst_8 {dimension_numbers = #tpu.dot_dimension_numbers<[1], [1], [0], [0], [0, 0, 1, 0], [], []>} : vector<16x32xf32>, vector<16x32xf32>, vector<16x16xf32> -> vector<16x16xf32>
    %c0_9 = arith.constant 0 : index
    %c0_10 = arith.constant 0 : index
    %10 = vector.load %arg5[%c0_9, %c0_10] : memref<1x16xf32, #tpu.memory_space<vmem>>, vector<1x16xf32>
    %11 = vector.broadcast %10 : vector<1x16xf32> to vector<16x16xf32>
    %12 = arith.addf %9, %11 : vector<16x16xf32>
    %c0_11 = arith.constant 0 : index
    %c0_12 = arith.constant 0 : index
    %13 = vector.load %arg6[%c0_11, %c0_12] : memref<16x16xf32, #tpu.memory_space<vmem>>, vector<16x16xf32>
    tpu.vector_store %arg6[%c0_11, %c0_12], %12 {strides = array<i32>} : memref<16x16xf32, #tpu.memory_space<vmem>>, vector<16x16xf32>,
    return
  }
  func.func @transform_0(%arg0: i32) -> (i32, i32) {
    %c0_i32 = arith.constant 0 : i32
    %c0_i32_0 = arith.constant 0 : i32
    return %arg0, %c0_i32 : i32, i32
  }
  func.func @transform_1(%arg0: i32) -> (i32, i32) {
    %c0_i32 = arith.constant 0 : i32
    %c0_i32_0 = arith.constant 0 : i32
    %c0_i32_1 = arith.constant 0 : i32
    return %c0_i32, %c0_i32_0 : i32, i32
  }
  func.func @transform_2(%arg0: i32) -> (i32, i32) {
    %c0_i32 = arith.constant 0 : i32
    %c0_i32_0 = arith.constant 0 : i32
    %c0_i32_1 = arith.constant 0 : i32
    return %c0_i32, %c0_i32_0 : i32, i32
  }
  func.func @transform_3(%arg0: i32) -> (i32, i32) {
    %c0_i32 = arith.constant 0 : i32
    %c0_i32_0 = arith.constant 0 : i32
    %c0_i32_1 = arith.constant 0 : i32
    return %c0_i32, %c0_i32_0 : i32, i32
  }
  func.func @transform_4(%arg0: i32) -> (i32, i32) {
    %c0_i32 = arith.constant 0 : i32
    %c0_i32_0 = arith.constant 0 : i32
    %c0_i32_1 = arith.constant 0 : i32
    return %c0_i32, %c0_i32_0 : i32, i32
  }
  func.func @transform_5(%arg0: i32) -> (i32, i32) {
    %c0_i32 = arith.constant 0 : i32
    %c0_i32_0 = arith.constant 0 : i32
    return %arg0, %c0_i32 : i32, i32
  }
}

</mosaic_0001>

<llo_original>
// kernel: tpu_custom_call.1
$region0: #{tpu_custom_call.1}
  #allocation0 [shape = 'u32[]', space=smem, size = 0x4, offset = 0x4, fixed_abs, tag = 'smem constant byte address 0x4 - core index']
  #allocation1 [shape = 'u32[144,128]{1,0:T(1,128)}', space=vmem, size = 0x12000, scoped, tag = 'internal scratch']
  %s0 = inlined_call_operand.hbm [shape: f32[16,64], index: 0, kind: input, shape index: {}]
  %s1 = inlined_call_operand.hbm [shape: f32[32,64], index: 1, kind: input, shape index: {}]
  %s2 = inlined_call_operand.vmem [shape: f32[1,32], index: 2, kind: input, shape index: {}]
  %s3 = inlined_call_operand.hbm [shape: f32[16,32], index: 3, kind: input, shape index: {}]
  %s4 = inlined_call_operand.vmem [shape: f32[1,16], index: 4, kind: input, shape index: {}]
  %s5 = inlined_call_operand.hbm [shape: f32[16,16], index: 5, kind: output, shape index: {}]
  %s6 = sld [smem:[#allocation0]]
  $region42: #{tpu_custom_call.1} parent=0
    _
  %s8 = ssub.s32 1, %s6
  %s9 = scalar_select 0, %s8, %s6
  $region1: #{tpu_custom_call.1} parent=0
    #allocation2 [shape = 'u8[8192]{0}', space=vmem, size = 0x2000, scoped, tag = 'input window, operand 0, single buffered']
    #allocation3 [shape = 's32[1]{0}', space=sflag, size = 0x4, scoped, tag = 'scoped memory for tpu_custom_call.1']
    #allocation4 [shape = 's32[1]{0}', space=sflag, size = 0x4, scoped, tag = 'scoped memory for tpu_custom_call.1']
    #allocation5 [shape = 'u8[16384]{0}', space=vmem, size = 0x4000, scoped, tag = 'input window, operand 1, single buffered']
    #allocation6 [shape = 's32[1]{0}', space=sflag, size = 0x4, scoped, tag = 'scoped memory for tpu_custom_call.1']
    #allocation7 [shape = 'u8[8192]{0}', space=vmem, size = 0x2000, scoped, tag = 'input window, operand 3, single buffered']
    #allocation8 [shape = 'u8[8192]{0}', space=vmem, size = 0x2000, scoped, tag = 'output window, operand 0, single buffered']
    %10 = vsyncpa [#allocation3], 0
    %11 = vsyncpa [#allocation6], 0
    %12 = vsyncpa [#allocation4], 0
    // Predicated region
    $region2: #{tpu_custom_call.1} parent=1 // pred_check
      _
    $region3: #{tpu_custom_call.1} parent=1 // pred_check_branch
      %14 = sbr.rel (0) target = $region5
    $region4: #{tpu_custom_call.1} parent=1 // pred_region
      %s16 = ssub.s32 256, 256
      %17 = vsyncadd [#allocation3], %s16
      %s18 = sshll.u32 [#allocation2], 4
      %s19 = int_to_ptr.vmem [resolvable:$true] %s18
      %24 = dma.hbm_to_vmem [thread:$0]  %s0, 256, %s19, [#allocation3], 128, 128, 8
    $region5: #{tpu_custom_call.1} parent=1 // pred_fallthru
      _
    // Predicated region
    $region6: #{tpu_custom_call.1} parent=1 // pred_check
      _
    $region7: #{tpu_custom_call.1} parent=1 // pred_check_branch
      %26 = sbr.rel (0) target = $region9
    $region8: #{tpu_custom_call.1} parent=1 // pred_region
      %s28 = ssub.s32 512, 512
      %29 = vsyncadd [#allocation6], %s28
      %s30 = sshll.u32 [#allocation5], 4
      %s31 = int_to_ptr.vmem [resolvable:$true] %s30
      %36 = dma.hbm_to_vmem [thread:$0]  %s1, 512, %s31, [#allocation6], 128, 128, 8
    $region9: #{tpu_custom_call.1} parent=1 // pred_fallthru
      _
    // Predicated region
    $region10: #{tpu_custom_call.1} parent=1 // pred_check
      _
    $region11: #{tpu_custom_call.1} parent=1 // pred_check_branch
      %38 = sbr.rel (0) target = $region13
    $region12: #{tpu_custom_call.1} parent=1 // pred_region
      _
    $region13: #{tpu_custom_call.1} parent=1 // pred_fallthru
      _
    // Predicated region
    $region14: #{tpu_custom_call.1} parent=1 // pred_check
      _
    $region15: #{tpu_custom_call.1} parent=1 // pred_check_branch
      %40 = sbr.rel (0) target = $region17
    $region16: #{tpu_custom_call.1} parent=1 // pred_region
      %s42 = ssub.s32 256, 256
      %43 = vsyncadd [#allocation6], %s42
      %s44 = sshll.u32 [#allocation7], 4
      %s45 = int_to_ptr.vmem [resolvable:$true] %s44
      %50 = dma.hbm_to_vmem [thread:$0]  %s3, 256, %s45, [#allocation6], 128, 128, 8
    $region17: #{tpu_custom_call.1} parent=1 // pred_fallthru
      _
    // Predicated region
    $region18: #{tpu_custom_call.1} parent=1 // pred_check
      _
    $region19: #{tpu_custom_call.1} parent=1 // pred_check_branch
      %52 = sbr.rel (0) target = $region21
    $region20: #{tpu_custom_call.1} parent=1 // pred_region
      _
    $region21: #{tpu_custom_call.1} parent=1 // pred_fallthru
      _
    // Predicated region
    $region22: #{tpu_custom_call.1} parent=1 // pred_check
      _
    $region23: #{tpu_custom_call.1} parent=1 // pred_check_branch
      %54 = sbr.rel (0) target = $region25
    $region24: #{tpu_custom_call.1} parent=1 // pred_region
      %55 = dma.done [#allocation3], 256
    $region25: #{tpu_custom_call.1} parent=1 // pred_fallthru
      _
    // Predicated region
    $region26: #{tpu_custom_call.1} parent=1 // pred_check
      _
    $region27: #{tpu_custom_call.1} parent=1 // pred_check_branch
      %57 = sbr.rel (0) target = $region29
    $region28: #{tpu_custom_call.1} parent=1 // pred_region
      %58 = dma.done [#allocation6], 512
    $region29: #{tpu_custom_call.1} parent=1 // pred_fallthru
      _
    // Predicated region
    $region30: #{tpu_custom_call.1} parent=1 // pred_check
      _
    $region31: #{tpu_custom_call.1} parent=1 // pred_check_branch
      %60 = sbr.rel (0) target = $region33
    $region32: #{tpu_custom_call.1} parent=1 // pred_region
      %61 = dma.done [#allocation6], 256
    $region33: #{tpu_custom_call.1} parent=1 // pred_fallthru
      _
    %v62 = vld [vmem:[#allocation2] sm:$0xff]
    %v63 = vld [vmem:[#allocation2 + $0x8] sm:$0xff]
    %v64 = vld [vmem:[#allocation5] sm:$0xff]
    %v65 = vld [vmem:[#allocation5 + $0x8] sm:$0xff]
    %v66 = vld [vmem:[#allocation5 + $0x10] sm:$0xff]
    %v67 = vld [vmem:[#allocation5 + $0x18] sm:$0xff]
    %v68 = vld [vmem:[%s2] sm:$0x1]
    %v70 = vlaneseq
    %v71 = vshrl.u32 %v70, 7
    %v72 = vsub.s32 0, %v71
    %v73 = vrot.slane %v68, %v72
    %vm75 = vcmask 523264
    %v77 = vsel %vm75, %v62, 0
    %v80 = vsel %vm75, %v63, 0
    %v83 = vsel %vm75, %v64, 0
    %v86 = vsel %vm75, %v65, 0
    %v89 = vsel %vm75, %v66, 0
    %v92 = vsel %vm75, %v67, 0
    %94 = vmatprep.subr.mxu0 0.0
    %95 = vmatpush1.xpose.msra.mxu0 %v83
    %96 = vmatprep.subr.mxu0 0.0
    %97 = vmatpush1.xpose.msra.mxu0 %v86
    %98 = vmatprep.subr.mxu0 0.0
    %99 = vmatpush1.xpose.msra.mxu0 %v89
    %100 = vmatprep.subr.mxu0 0.0
    %101 = vmatpush1.xpose.msra.mxu0 %v92
    %102 = vmatprep.subr.mxu0 0.0
    %103 = vmatpush1.xpose.msra.mxu0 0.0
    %104 = vmatprep.subr.mxu0 0.0
    %105 = vmatpush1.xpose.msra.mxu0 0.0
    %106 = vmatprep.subr.mxu0 0.0
    %107 = vmatpush1.xpose.msra.mxu0 0.0
    %108 = vmatprep.subr.mxu0 0.0
    %109 = vmatpush1.xpose.msra.mxu0 0.0
    %110 = vmatprep.subr.mxu0 0.0
    %111 = vmatpush1.xpose.msra.mxu0 0.0
    %112 = vmatprep.subr.mxu0 0.0
    %113 = vmatpush1.xpose.msra.mxu0 0.0
    %114 = vmatprep.subr.mxu0 0.0
    %115 = vmatpush1.xpose.msra.mxu0 0.0
    %116 = vmatprep.subr.mxu0 0.0
    %117 = vmatpush1.xpose.msra.mxu0 0.0
    %118 = vmatprep.subr.mxu0 0.0
    %119 = vmatpush1.xpose.msra.mxu0 0.0
    %120 = vmatprep.subr.mxu0 0.0
    %121 = vmatpush1.xpose.msra.mxu0 0.0
    %122 = vmatprep.subr.mxu0 0.0
    %123 = vmatpush1.xpose.msra.mxu0 0.0
    %124 = vmatprep.subr.mxu0 0.0
    %125 = vmatpush1.xpose.msra.mxu0 0.0
    %126 = vmatprep.subr.mxu0 0.0
    %127 = vmatpush1.xpose.msra.mxu0 0.0
    %128 = vmatprep.subr.mxu0 0.0
    %129 = vmatpush1.xpose.msra.mxu0 0.0
    %130 = vmatprep.subr.mxu0 0.0
    %131 = vmatpush1.xpose.msra.mxu0 0.0
    %132 = vmatprep.subr.mxu0 0.0
    %133 = vmatpush1.xpose.msra.mxu0 0.0
    %134 = vmatprep.subr.mxu0 0.0
    %135 = vmatpush1.xpose.msra.mxu0 0.0
    %136 = vmatprep.subr.mxu0 0.0
    %137 = vmatpush1.xpose.msra.mxu0 0.0
    %138 = vmatprep.subr.mxu0 0.0
    %139 = vmatpush1.xpose.msra.mxu0 0.0
    %140 = vmatprep.subr.mxu0 0.0
    %141 = vmatpush1.xpose.msra.mxu0 0.0
    %142 = vmatprep.subr.mxu0 0.0
    %143 = vmatpush1.xpose.msra.mxu0 0.0
    %144 = vmatprep.subr.mxu0 0.0
    %145 = vmatpush1.xpose.msra.mxu0 0.0
    %146 = vmatprep.subr.mxu0 0.0
    %147 = vmatpush1.xpose.msra.mxu0 0.0
    %148 = vmatprep.subr.mxu0 0.0
    %149 = vmatpush1.xpose.msra.mxu0 0.0
    %150 = vmatprep.subr.mxu0 0.0
    %151 = vmatpush1.xpose.msra.mxu0 0.0
    %152 = vmatprep.subr.mxu0 0.0
    %153 = vmatpush1.xpose.msra.mxu0 0.0
    %154 = vmatprep.subr.mxu0 0.0
    %155 = vmatpush1.xpose.msra.mxu0 0.0
    %156 = vmatprep.subr.mxu0 0.0
    %157 = vmatpush1.xpose.msra.mxu0 0.0
    %158 = vmatprep.mubr.f32.mxu0 0.0
    %159 = vmatmul.mubr.f32.gmra.mrb[0].mxu0 %v77
    %v160 = vpop.f32.mrb[0].mxu0
    %v161 = vadd.f32 %v73, %v160
    %v162 = vpop.f32.mrb[0].mxu0
    %163 = vmatprep.mubr.f32.mxu0 0.0
    %164 = vmatmul.mubr.f32.gmra.mrb[0].mxu0 %v80
    %v165 = vpop.f32.mrb[0].mxu0
    %v166 = vadd.f32 %v73, %v165
    %v167 = vpop.f32.mrb[0].mxu0
    %168 = vdwg.mxu0
    %v169 = vmax.f32 %v161, 0.0
    %v170 = vmax.f32 %v166, 0.0
    %v171 = vld [vmem:[#allocation7] sm:$0xff]
    %v172 = vld [vmem:[#allocation7 + $0x8] sm:$0xff]
    %v173 = vld [vmem:[%s4] sm:$0x1]
    %v175 = vlaneseq
    %v176 = vshrl.u32 %v175, 7
    %v177 = vsub.s32 0, %v176
    %v178 = vrot.slane %v173, %v177
    %vm180 = vcmask 261120
    %v182 = vsel %vm180, %v169, 0
    %v185 = vsel %vm180, %v170, 0
    %v188 = vsel %vm180, %v171, 0
    %v191 = vsel %vm180, %v172, 0
    %193 = vmatprep.subr.mxu0 0.0
    %194 = vmatpush1.xpose.msra.mxu0 %v188
    %195 = vmatprep.subr.mxu0 0.0
    %196 = vmatpush1.xpose.msra.mxu0 %v191
    %197 = vmatprep.subr.mxu0 0.0
    %198 = vmatpush1.xpose.msra.mxu0 0.0
    %199 = vmatprep.subr.mxu0 0.0
    %200 = vmatpush1.xpose.msra.mxu0 0.0
    %201 = vmatprep.subr.mxu0 0.0
    %202 = vmatpush1.xpose.msra.mxu0 0.0
    %203 = vmatprep.subr.mxu0 0.0
    %204 = vmatpush1.xpose.msra.mxu0 0.0
    %205 = vmatprep.subr.mxu0 0.0
    %206 = vmatpush1.xpose.msra.mxu0 0.0
    %207 = vmatprep.subr.mxu0 0.0
    %208 = vmatpush1.xpose.msra.mxu0 0.0
    %209 = vmatprep.subr.mxu0 0.0
    %210 = vmatpush1.xpose.msra.mxu0 0.0
    %211 = vmatprep.subr.mxu0 0.0
    %212 = vmatpush1.xpose.msra.mxu0 0.0
    %213 = vmatprep.subr.mxu0 0.0
    %214 = vmatpush1.xpose.msra.mxu0 0.0
    %215 = vmatprep.subr.mxu0 0.0
    %216 = vmatpush1.xpose.msra.mxu0 0.0
    %217 = vmatprep.subr.mxu0 0.0
    %218 = vmatpush1.xpose.msra.mxu0 0.0
    %219 = vmatprep.subr.mxu0 0.0
    %220 = vmatpush1.xpose.msra.mxu0 0.0
    %221 = vmatprep.subr.mxu0 0.0
    %222 = vmatpush1.xpose.msra.mxu0 0.0
    %223 = vmatprep.subr.mxu0 0.0
    %224 = vmatpush1.xpose.msra.mxu0 0.0
    %225 = vmatprep.subr.mxu0 0.0
    %226 = vmatpush1.xpose.msra.mxu0 0.0
    %227 = vmatprep.subr.mxu0 0.0
    %228 = vmatpush1.xpose.msra.mxu0 0.0
    %229 = vmatprep.subr.mxu0 0.0
    %230 = vmatpush1.xpose.msra.mxu0 0.0
    %231 = vmatprep.subr.mxu0 0.0
    %232 = vmatpush1.xpose.msra.mxu0 0.0
    %233 = vmatprep.subr.mxu0 0.0
    %234 = vmatpush1.xpose.msra.mxu0 0.0
    %235 = vmatprep.subr.mxu0 0.0
    %236 = vmatpush1.xpose.msra.mxu0 0.0
    %237 = vmatprep.subr.mxu0 0.0
    %238 = vmatpush1.xpose.msra.mxu0 0.0
    %239 = vmatprep.subr.mxu0 0.0
    %240 = vmatpush1.xpose.msra.mxu0 0.0
    %241 = vmatprep.subr.mxu0 0.0
    %242 = vmatpush1.xpose.msra.mxu0 0.0
    %243 = vmatprep.subr.mxu0 0.0
    %244 = vmatpush1.xpose.msra.mxu0 0.0
    %245 = vmatprep.subr.mxu0 0.0
    %246 = vmatpush1.xpose.msra.mxu0 0.0
    %247 = vmatprep.subr.mxu0 0.0
    %248 = vmatpush1.xpose.msra.mxu0 0.0
    %249 = vmatprep.subr.mxu0 0.0
    %250 = vmatpush1.xpose.msra.mxu0 0.0
    %251 = vmatprep.subr.mxu0 0.0
    %252 = vmatpush1.xpose.msra.mxu0 0.0
    %253 = vmatprep.subr.mxu0 0.0
    %254 = vmatpush1.xpose.msra.mxu0 0.0
    %255 = vmatprep.subr.mxu0 0.0
    %256 = vmatpush1.xpose.msra.mxu0 0.0
    %257 = vmatprep.mubr.f32.mxu0 0.0
    %258 = vmatmul.mubr.f32.gmra.mrb[0].mxu0 %v182
    %v259 = vpop.f32.mrb[0].mxu0
    %v260 = vadd.f32 %v178, %v259
    %v261 = vpop.f32.mrb[0].mxu0
    %262 = vmatprep.mubr.f32.mxu0 0.0
    %263 = vmatmul.mubr.f32.gmra.mrb[0].mxu0 %v185
    %v264 = vpop.f32.mrb[0].mxu0
    %v265 = vadd.f32 %v178, %v264
    %v266 = vpop.f32.mrb[0].mxu0
    %267 = vdwg.mxu0
    %vm268 = vcmask 130048
    %269 = vst.msk [vmem:[#allocation8] sm:$0xff] %vm268, %v260
    %270 = vst.msk [vmem:[#allocation8 + $0x8] sm:$0xff] %vm268, %v265
    // Predicated region
    $region34: #{tpu_custom_call.1} parent=1 // pred_check
      _
    $region35: #{tpu_custom_call.1} parent=1 // pred_check_branch
      %272 = sbr.rel (0) target = $region37
    $region36: #{tpu_custom_call.1} parent=1 // pred_region
      %s274 = ssub.s32 256, 256
      %275 = vsyncadd [#allocation4], %s274
      %s276 = sshll.u32 [#allocation8], 4
      %s277 = int_to_ptr.vmem [resolvable:$true] %s276
      %282 = dma.vmem_to_hbm [thread:$0]  %s277, 256, %s5, [#allocation4], 128, 128, 8
    $region37: #{tpu_custom_call.1} parent=1 // pred_fallthru
      _
    // Predicated region
    $region38: #{tpu_custom_call.1} parent=1 // pred_check
      _
    $region39: #{tpu_custom_call.1} parent=1 // pred_check_branch
      %284 = sbr.rel (0) target = $region41
    $region40: #{tpu_custom_call.1} parent=1 // pred_region
      %285 = dma.done [#allocation4], 256
    $region41: #{tpu_custom_call.1} parent=1 // pred_fallthru
      _
    %286 = vsyncpa [#allocation3], 1
    %287 = vsyncpa [#allocation6], 1
    %288 = vsyncpa [#allocation4], 1

</llo_original>
